<compile_context>
chip_gen: v7x
topology: tpu7x:2x2x1
jax: 0.10.0
libtpu: 0.0.40
codegen_flags: <defaults>
</compile_context>

<pallas_src>
import functools

import jax
import jax.numpy as jnp
from jax.experimental import pallas as pl
from jax.experimental.pallas import tpu as pltpu


def _mlp_kernel(n_hidden, x_ref, *refs):
    """Forward pass for one batch tile, batch on the lane axis.

    x_ref : (3, TILE_B)   input features (transposed)
    refs  : (w0, b0, w1, b1, ..., w_out_t, b_out, o_ref)
            w0      : (u0, 3)           torch layout (out, in)
            wi      : (ui, u_{i-1})     i = 1..n_hidden-1
            bi      : (ui, 1)
            w_out_t : (u_last, 1)       output weight stored transposed
            b_out   : (1, 1)
    o_ref : (1, TILE_B)
    """
    o_ref = refs[-1]
    p = refs[:-1]

    x = x_ref[...]                                   # (3, TILE_B)

    # --- first hidden layer: in_features == 3 -> VPU broadcast-MAC (skip MXU padding)
    w0 = p[0][...]                                   # (u0, 3)
    b0 = p[1][...]                                   # (u0, 1)
    h = b0 + w0[:, 0:1] * x[0:1, :]
    for k in range(1, 3):
        h = h + w0[:, k:k + 1] * x[k:k + 1, :]
    h = jnp.maximum(h, 0.0)                          # ReLU (hidden_activation)

    # --- intermediate hidden layers: square matmuls -> MXU, f32 accumulation
    for li in range(1, n_hidden):
        w = p[2 * li][...]                           # (u_li, u_{li-1})
        b = p[2 * li + 1][...]                       # (u_li, 1)
        h = jnp.dot(w, h, preferred_element_type=jnp.float32) + b
        h = jnp.maximum(h, 0.0)                      # ReLU

    # --- output layer: out_features == 1 -> elementwise mul + cross-sublane reduce (XLU)
    w_out_t = p[2 * n_hidden][...]                   # (u_last, 1)
    b_out = p[2 * n_hidden + 1][...]                 # (1, 1)
    y = jnp.sum(w_out_t * h, axis=0, keepdims=True) + b_out  # (1, TILE_B)
    o_ref[...] = jax.nn.sigmoid(y)                   # Sigmoid (output_activation)


def mlp_forward(x, params, *, tile_b=8192, interpret=False):
    """x: (batch, 3) float32; params: torch-layout [(W (out,in), b (out,)), ...]."""
    batch = x.shape[0]
    n_hidden = len(params) - 1

    # Batch goes on the lane axis: pad to a multiple of 128, pick a lane-dense tile.
    padded = pl.cdiv(batch, 128) * 128
    tile_b = min(tile_b, padded)
    padded = pl.cdiv(padded, tile_b) * tile_b
    nb = padded // tile_b

    x_t = jnp.zeros((3, padded), jnp.float32).at[:, :batch].set(
        jnp.asarray(x, jnp.float32).T)

    # Kernel-side parameter layout (biases as columns; output weight transposed).
    flat = []
    for li, (w, b) in enumerate(params):
        w = jnp.asarray(w, jnp.float32)
        if li == n_hidden:
            flat.append(w.T)                                   # (u_last, 1)
        else:
            flat.append(w)                                     # (out, in)
        flat.append(jnp.asarray(b, jnp.float32).reshape(-1, 1))  # (out, 1)

    kernel = functools.partial(_mlp_kernel, n_hidden)

    in_specs = [pl.BlockSpec((3, tile_b), lambda i: (0, i))]
    for prm in flat:
        # Constant block index -> parameters DMA'd once, VMEM-resident across steps.
        in_specs.append(pl.BlockSpec(prm.shape, lambda i: (0, 0)))

    out = pl.pallas_call(
        kernel,
        out_shape=jax.ShapeDtypeStruct((1, padded), jnp.float32),
        grid_spec=pltpu.PrefetchScalarGridSpec(
            num_scalar_prefetch=0,
            grid=(nb,),
            in_specs=in_specs,
            out_specs=pl.BlockSpec((1, tile_b), lambda i: (0, i)),
        ),
        compiler_params=pltpu.CompilerParams(
            dimension_semantics=("parallel",),   # shard batch tiles across TCs (v7x)
        ),
        interpret=interpret,
    )(x_t, *flat)

    return out[0, :batch].reshape(batch, 1)


def init_params(key, n_layers, n_units):
    """torch.nn.Linear default init: U(-1/sqrt(fan_in), 1/sqrt(fan_in)); torch layout."""
    sizes = [3] + list(n_units) + [1]
    params = []
    for i in range(len(sizes) - 1):
        fan_in, fan_out = sizes[i], sizes[i + 1]
        key, kw, kb = jax.random.split(key, 3)
        bound = 1.0 / (fan_in ** 0.5)
        w = jax.random.uniform(kw, (fan_out, fan_in), jnp.float32, -bound, bound)
        b = jax.random.uniform(kb, (fan_out,), jnp.float32, -bound, bound)
        params.append((w, b))
    assert len(params) == n_layers + 1
    return params


def reference_forward(x, params):
    """Pure-JAX reference of the same forward pass (torch-layout params)."""
    h = x
    for w, b in params[:-1]:
        h = jnp.maximum(h @ w.T + b, 0.0)
    w, b = params[-1]
    return jax.nn.sigmoid(h @ w.T + b)


if __name__ == "__main__":
    key = jax.random.PRNGKey(0)
    k_x, k_x2, k_p = jax.random.split(key, 3)

    n_layers = 2
    n_units = [32, 32]
    params = init_params(k_p, n_layers, n_units)

    # Small case (matches the module's documented interface).
    batch = 8
    x = jax.random.normal(k_x, (batch, 3), jnp.float32)
    out = jax.block_until_ready(mlp_forward(x, params))
    ref = reference_forward(x, params)
    assert out.shape == (batch, 1)
    assert jnp.allclose(out, ref, atol=1e-5, rtol=1e-4), "mismatch vs JAX reference (small)"

    # Multi-tile case: exercises the parallel batch grid and the padded last tile.
    batch2 = 300
    x2 = jax.random.normal(k_x2, (batch2, 3), jnp.float32)
    out2 = jax.block_until_ready(mlp_forward(x2, params, tile_b=128))
    ref2 = reference_forward(x2, params)
    assert out2.shape == (batch2, 1)
    assert jnp.allclose(out2, ref2, atol=1e-5, rtol=1e-4), "mismatch vs JAX reference (tiled)"

    print("KERNEL_OK")
</pallas_src>

<mosaic_0001>
module attributes {stable_mosaic.version = 11 : i64} {
  func.func @_mlp_kernel(%arg0: i32, %arg1: memref<3x128xf32, #tpu.memory_space<vmem>>, %arg2: memref<32x3xf32, #tpu.memory_space<vmem>>, %arg3: memref<32x1xf32, #tpu.memory_space<vmem>>, %arg4: memref<32x32xf32, #tpu.memory_space<vmem>>, %arg5: memref<32x1xf32, #tpu.memory_space<vmem>>, %arg6: memref<32x1xf32, #tpu.memory_space<vmem>>, %arg7: memref<1x1xf32, #tpu.memory_space<vmem>>, %arg8: memref<1x128xf32, #tpu.memory_space<vmem>>) attributes {dimension_semantics = [#tpu.dimension_semantics<parallel>], iteration_bounds = array<i64: 1>, scalar_prefetch = 0 : i64, scratch_operands = 0 : i64, tpu.core_type = #tpu.core_type<tc>, window_params = [{transform_indices = @transform_0, window_bounds = array<i64: 3, 128>}, {pipeline_mode = #tpu.pipeline_mode<synchronous>, transform_indices = @transform_1, window_bounds = array<i64: 32, 3>}, {pipeline_mode = #tpu.pipeline_mode<synchronous>, transform_indices = @transform_2, window_bounds = array<i64: 32, 1>}, {pipeline_mode = #tpu.pipeline_mode<synchronous>, transform_indices = @transform_3, window_bounds = array<i64: 32, 32>}, {pipeline_mode = #tpu.pipeline_mode<synchronous>, transform_indices = @transform_4, window_bounds = array<i64: 32, 1>}, {pipeline_mode = #tpu.pipeline_mode<synchronous>, transform_indices = @transform_5, window_bounds = array<i64: 32, 1>}, {pipeline_mode = #tpu.pipeline_mode<synchronous>, transform_indices = @transform_6, window_bounds = array<i64: 1, 1>}, {transform_indices = @transform_7, window_bounds = array<i64: 1, 128>}]} {
    %c0 = arith.constant 0 : index
    %c0_0 = arith.constant 0 : index
    %0 = vector.load %arg1[%c0, %c0_0] : memref<3x128xf32, #tpu.memory_space<vmem>>, vector<3x128xf32>
    %c0_1 = arith.constant 0 : index
    %c0_2 = arith.constant 0 : index
    %1 = vector.load %arg2[%c0_1, %c0_2] : memref<32x3xf32, #tpu.memory_space<vmem>>, vector<32x3xf32>
    %c0_3 = arith.constant 0 : index
    %c0_4 = arith.constant 0 : index
    %2 = vector.load %arg3[%c0_3, %c0_4] : memref<32x1xf32, #tpu.memory_space<vmem>>, vector<32x1xf32>
    %3 = vector.extract_strided_slice %1 {offsets = [0, 0], sizes = [32, 1], strides = [1, 1]} : vector<32x3xf32> to vector<32x1xf32>
    %4 = vector.extract_strided_slice %0 {offsets = [0, 0], sizes = [1, 128], strides = [1, 1]} : vector<3x128xf32> to vector<1x128xf32>
    %5 = vector.broadcast %3 : vector<32x1xf32> to vector<32x128xf32>
    %6 = vector.broadcast %4 : vector<1x128xf32> to vector<32x128xf32>
    %7 = arith.mulf %5, %6 : vector<32x128xf32>
    %8 = vector.broadcast %2 : vector<32x1xf32> to vector<32x128xf32>
    %9 = arith.addf %8, %7 : vector<32x128xf32>
    %10 = vector.extract_strided_slice %1 {offsets = [0, 1], sizes = [32, 1], strides = [1, 1]} : vector<32x3xf32> to vector<32x1xf32>
    %11 = vector.extract_strided_slice %0 {offsets = [1, 0], sizes = [1, 128], strides = [1, 1]} : vector<3x128xf32> to vector<1x128xf32>
    %12 = vector.broadcast %10 : vector<32x1xf32> to vector<32x128xf32>
    %13 = vector.broadcast %11 : vector<1x128xf32> to vector<32x128xf32>
    %14 = arith.mulf %12, %13 : vector<32x128xf32>
    %15 = arith.addf %9, %14 : vector<32x128xf32>
    %16 = vector.extract_strided_slice %1 {offsets = [0, 2], sizes = [32, 1], strides = [1, 1]} : vector<32x3xf32> to vector<32x1xf32>
    %17 = vector.extract_strided_slice %0 {offsets = [2, 0], sizes = [1, 128], strides = [1, 1]} : vector<3x128xf32> to vector<1x128xf32>
    %18 = vector.broadcast %16 : vector<32x1xf32> to vector<32x128xf32>
    %19 = vector.broadcast %17 : vector<1x128xf32> to vector<32x128xf32>
    %20 = arith.mulf %18, %19 : vector<32x128xf32>
    %21 = arith.addf %15, %20 : vector<32x128xf32>
    %cst = arith.constant 0.000000e+00 : f32
    %22 = vector.broadcast %cst : f32 to vector<32x128xf32>
    %23 = arith.maximumf %21, %22 : vector<32x128xf32>
    %c0_5 = arith.constant 0 : index
    %c0_6 = arith.constant 0 : index
    %24 = vector.load %arg4[%c0_5, %c0_6] : memref<32x32xf32, #tpu.memory_space<vmem>>, vector<32x32xf32>
    %c0_7 = arith.constant 0 : index
    %c0_8 = arith.constant 0 : index
    %25 = vector.load %arg5[%c0_7, %c0_8] : memref<32x1xf32, #tpu.memory_space<vmem>>, vector<32x1xf32>
    %cst_9 = arith.constant dense<0.000000e+00> : vector<32x128xf32>
    %26 = tpu.matmul %24, %23, %cst_9 {dimension_numbers = #tpu.dot_dimension_numbers<[1], [0], [0], [1], [0, 0, 1, 1], [], []>} : vector<32x32xf32>, vector<32x128xf32>, vector<32x128xf32> -> vector<32x128xf32>
    %27 = vector.broadcast %25 : vector<32x1xf32> to vector<32x128xf32>
    %28 = arith.addf %26, %27 : vector<32x128xf32>
    %cst_10 = arith.constant 0.000000e+00 : f32
    %29 = vector.broadcast %cst_10 : f32 to vector<32x128xf32>
    %30 = arith.maximumf %28, %29 : vector<32x128xf32>
    %c0_11 = arith.constant 0 : index
    %c0_12 = arith.constant 0 : index
    %31 = vector.load %arg6[%c0_11, %c0_12] : memref<32x1xf32, #tpu.memory_space<vmem>>, vector<32x1xf32>
    %c0_13 = arith.constant 0 : index
    %c0_14 = arith.constant 0 : index
    %32 = vector.load %arg7[%c0_13, %c0_14] : memref<1x1xf32, #tpu.memory_space<vmem>>, vector<1x1xf32>
    %33 = vector.broadcast %31 : vector<32x1xf32> to vector<32x128xf32>
    %34 = arith.mulf %33, %30 : vector<32x128xf32>
    %cst_15 = arith.constant dense<0.000000e+00> : vector<128xf32>
    %35 = vector.multi_reduction <add>, %34, %cst_15 [0] : vector<32x128xf32> to vector<128xf32>
    %36 = vector.shape_cast %35 : vector<128xf32> to vector<1x128xf32>
    %37 = vector.broadcast %32 : vector<1x1xf32> to vector<1x128xf32>
    %38 = arith.addf %36, %37 : vector<1x128xf32>
    %39 = arith.negf %38 : vector<1x128xf32>
    %40 = math.exp %39 : vector<1x128xf32>
    %cst_16 = arith.constant 1.000000e+00 : f32
    %41 = vector.broadcast %cst_16 : f32 to vector<1x128xf32>
    %42 = arith.addf %41, %40 : vector<1x128xf32>
    %43 = arith.divf %41, %42 : vector<1x128xf32>
    %c0_17 = arith.constant 0 : index
    %c0_18 = arith.constant 0 : index
    %44 = vector.load %arg8[%c0_17, %c0_18] : memref<1x128xf32, #tpu.memory_space<vmem>>, vector<1x128xf32>
    tpu.vector_store %arg8[%c0_17, %c0_18], %43 {strides = array<i32>} : memref<1x128xf32, #tpu.memory_space<vmem>>, vector<1x128xf32>,
    return
  }
  func.func @transform_0(%arg0: i32) -> (i32, i32) {
    %c0_i32 = arith.constant 0 : i32
    %c0_i32_0 = arith.constant 0 : i32
    return %c0_i32, %arg0 : i32, i32
  }
  func.func @transform_1(%arg0: i32) -> (i32, i32) {
    %c0_i32 = arith.constant 0 : i32
    %c0_i32_0 = arith.constant 0 : i32
    %c0_i32_1 = arith.constant 0 : i32
    return %c0_i32, %c0_i32_0 : i32, i32
  }
  func.func @transform_2(%arg0: i32) -> (i32, i32) {
    %c0_i32 = arith.constant 0 : i32
    %c0_i32_0 = arith.constant 0 : i32
    %c0_i32_1 = arith.constant 0 : i32
    return %c0_i32, %c0_i32_0 : i32, i32
  }
  func.func @transform_3(%arg0: i32) -> (i32, i32) {
    %c0_i32 = arith.constant 0 : i32
    %c0_i32_0 = arith.constant 0 : i32
    %c0_i32_1 = arith.constant 0 : i32
    return %c0_i32, %c0_i32_0 : i32, i32
  }
  func.func @transform_4(%arg0: i32) -> (i32, i32) {
    %c0_i32 = arith.constant 0 : i32
    %c0_i32_0 = arith.constant 0 : i32
    %c0_i32_1 = arith.constant 0 : i32
    return %c0_i32, %c0_i32_0 : i32, i32
  }
  func.func @transform_5(%arg0: i32) -> (i32, i32) {
    %c0_i32 = arith.constant 0 : i32
    %c0_i32_0 = arith.constant 0 : i32
    %c0_i32_1 = arith.constant 0 : i32
    return %c0_i32, %c0_i32_0 : i32, i32
  }
  func.func @transform_6(%arg0: i32) -> (i32, i32) {
    %c0_i32 = arith.constant 0 : i32
    %c0_i32_0 = arith.constant 0 : i32
    %c0_i32_1 = arith.constant 0 : i32
    return %c0_i32, %c0_i32_0 : i32, i32
  }
  func.func @transform_7(%arg0: i32) -> (i32, i32) {
    %c0_i32 = arith.constant 0 : i32
    %c0_i32_0 = arith.constant 0 : i32
    return %c0_i32, %arg0 : i32, i32
  }
}

</mosaic_0001>

<llo_original>
// kernel: tpu_custom_call.1
$region0: #{tpu_custom_call.1}
  #allocation0 [shape = 'u32[]', space=smem, size = 0x4, offset = 0x4, fixed_abs, tag = 'smem constant byte address 0x4 - core index']
  #allocation1 [shape = 'u32[144,128]{1,0:T(1,128)}', space=vmem, size = 0x12000, scoped, tag = 'internal scratch']
  #allocation2 [shape = 'f32[1,1]{1,0:T(1,128)S(1)}', space=vmem, size = 0x200, scoped, tag = 'scoped memory for tpu_custom_call.1']
  %s0 = inlined_call_operand.vmem [shape: f32[3,128], index: 0, kind: input, shape index: {}]
  %s1 = inlined_call_operand.vmem [shape: f32[32,3], index: 1, kind: input, shape index: {}]
  %s2 = inlined_call_operand.vmem [shape: f32[32,1], index: 2, kind: input, shape index: {}]
  %s3 = inlined_call_operand.vmem [shape: f32[32,32], index: 3, kind: input, shape index: {}]
  %s4 = inlined_call_operand.vmem [shape: f32[32,1], index: 4, kind: input, shape index: {}]
  %s5 = inlined_call_operand.vmem [shape: f32[32,1], index: 5, kind: input, shape index: {}]
  %s6 = inlined_call_operand.<no memory space> [shape: f32[1,1], index: 6, kind: input, shape index: {}]
  %s7 = inlined_call_operand.hbm [shape: f32[1,128], index: 7, kind: output, shape index: {}]
  %s8 = sld [smem:[#allocation0]]
  $region38: #{tpu_custom_call.1} parent=0
    _
  %s10 = ssub.s32 1, %s8
  %s11 = scalar_select 0, %s10, %s8
  %v12 = vstv %s6
  %13 = vst [vmem:[#allocation2] sm:$0x1] %v12
  $region1: #{tpu_custom_call.1} parent=0
    #allocation3 [shape = 'u8[512]{0}', space=vmem, size = 0x400, scoped, tag = 'output window, operand 0, single buffered']
    #allocation4 [shape = 's32[1]{0}', space=sflag, size = 0x4, scoped, tag = 'scoped memory for tpu_custom_call.1']
    %14 = vsyncpa [#allocation4], 0
    // Predicated region
    $region2: #{tpu_custom_call.1} parent=1 // pred_check
      _
    $region3: #{tpu_custom_call.1} parent=1 // pred_check_branch
      %16 = sbr.rel (0) target = $region5
    $region4: #{tpu_custom_call.1} parent=1 // pred_region
      _
    $region5: #{tpu_custom_call.1} parent=1 // pred_fallthru
      _
    // Predicated region
    $region6: #{tpu_custom_call.1} parent=1 // pred_check
      _
    $region7: #{tpu_custom_call.1} parent=1 // pred_check_branch
      %18 = sbr.rel (0) target = $region9
    $region8: #{tpu_custom_call.1} parent=1 // pred_region
      _
    $region9: #{tpu_custom_call.1} parent=1 // pred_fallthru
      _
    // Predicated region
    $region10: #{tpu_custom_call.1} parent=1 // pred_check
      _
    $region11: #{tpu_custom_call.1} parent=1 // pred_check_branch
      %20 = sbr.rel (0) target = $region13
    $region12: #{tpu_custom_call.1} parent=1 // pred_region
      _
    $region13: #{tpu_custom_call.1} parent=1 // pred_fallthru
      _
    // Predicated region
    $region14: #{tpu_custom_call.1} parent=1 // pred_check
      _
    $region15: #{tpu_custom_call.1} parent=1 // pred_check_branch
      %22 = sbr.rel (0) target = $region17
    $region16: #{tpu_custom_call.1} parent=1 // pred_region
      _
    $region17: #{tpu_custom_call.1} parent=1 // pred_fallthru
      _
    // Predicated region
    $region18: #{tpu_custom_call.1} parent=1 // pred_check
      _
    $region19: #{tpu_custom_call.1} parent=1 // pred_check_branch
      %24 = sbr.rel (0) target = $region21
    $region20: #{tpu_custom_call.1} parent=1 // pred_region
      _
    $region21: #{tpu_custom_call.1} parent=1 // pred_fallthru
      _
    // Predicated region
    $region22: #{tpu_custom_call.1} parent=1 // pred_check
      _
    $region23: #{tpu_custom_call.1} parent=1 // pred_check_branch
      %26 = sbr.rel (0) target = $region25
    $region24: #{tpu_custom_call.1} parent=1 // pred_region
      _
    $region25: #{tpu_custom_call.1} parent=1 // pred_fallthru
      _
    // Predicated region
    $region26: #{tpu_custom_call.1} parent=1 // pred_check
      _
    $region27: #{tpu_custom_call.1} parent=1 // pred_check_branch
      %28 = sbr.rel (0) target = $region29
    $region28: #{tpu_custom_call.1} parent=1 // pred_region
      _
    $region29: #{tpu_custom_call.1} parent=1 // pred_fallthru
      _
    %v29 = vld [vmem:[%s0] sm:$0x7]
    %v30 = vld [vmem:[%s1] sm:$0xff]
    %v31 = vld [vmem:[%s1 + $0x8] sm:$0xff]
    %v32 = vld [vmem:[%s1 + $0x10] sm:$0xff]
    %v33 = vld [vmem:[%s1 + $0x18] sm:$0xff]
    %v34 = vld [vmem:[%s2] sm:$0xff]
    %v35 = vld [vmem:[%s2 + $0x8] sm:$0xff]
    %v36 = vld [vmem:[%s2 + $0x10] sm:$0xff]
    %v37 = vld [vmem:[%s2 + $0x18] sm:$0xff]
    %39 = vset.pattern.permute.xlu0 0
    %40 = vperm.xlu0 %39, %v30
    %v41 = vpop.permute.xlu0 %40
    %44 = vset.pattern.permute.xlu0 0
    %45 = vperm.xlu0 %44, %v31
    %v46 = vpop.permute.xlu0 %45
    %49 = vset.pattern.permute.xlu0 0
    %50 = vperm.xlu0 %49, %v32
    %v51 = vpop.permute.xlu0 %50
    %54 = vset.pattern.permute.xlu0 0
    %55 = vperm.xlu0 %54, %v33
    %v56 = vpop.permute.xlu0 %55
    %v58 = vlaneseq
    %v59 = vshrl.u32 %v58, 7
    %v60 = vsub.s32 0, %v59
    %v61 = vrot.slane %v29, %v60
    %v62 = vmul.f32 %v41, %v61
    %v63 = vmul.f32 %v46, %v61
    %v64 = vmul.f32 %v51, %v61
    %v65 = vmul.f32 %v56, %v61
    %67 = vset.pattern.permute.xlu0 0
    %68 = vperm.xlu0 %67, %v34
    %v69 = vpop.permute.xlu0 %68
    %72 = vset.pattern.permute.xlu0 0
    %73 = vperm.xlu0 %72, %v35
    %v74 = vpop.permute.xlu0 %73
    %77 = vset.pattern.permute.xlu0 0
    %78 = vperm.xlu0 %77, %v36
    %v79 = vpop.permute.xlu0 %78
    %82 = vset.pattern.permute.xlu0 0
    %83 = vperm.xlu0 %82, %v37
    %v84 = vpop.permute.xlu0 %83
    %v86 = vadd.f32 %v69, %v62
    %v87 = vadd.f32 %v74, %v63
    %v88 = vadd.f32 %v79, %v64
    %v89 = vadd.f32 %v84, %v65
    %90 = vset.pattern.permute.xlu0 1
    %91 = vperm.xlu0 %90, %v30
    %v92 = vpop.permute.xlu0 %91
    %94 = vset.pattern.permute.xlu0 1
    %95 = vperm.xlu0 %94, %v31
    %v96 = vpop.permute.xlu0 %95
    %98 = vset.pattern.permute.xlu0 1
    %99 = vperm.xlu0 %98, %v32
    %v100 = vpop.permute.xlu0 %99
    %102 = vset.pattern.permute.xlu0 1
    %103 = vperm.xlu0 %102, %v33
    %v104 = vpop.permute.xlu0 %103
    %v106 = vlaneseq
    %v107 = vshrl.u32 %v106, 7
    %v108 = vsub.s32 1, %v107
    %v109 = vrot.slane %v29, %v108
    %v110 = vmul.f32 %v92, %v109
    %v111 = vmul.f32 %v96, %v109
    %v112 = vmul.f32 %v100, %v109
    %v113 = vmul.f32 %v104, %v109
    %v114 = vadd.f32 %v86, %v110
    %v115 = vadd.f32 %v87, %v111
    %v116 = vadd.f32 %v88, %v112
    %v117 = vadd.f32 %v89, %v113
    %118 = vset.pattern.permute.xlu0 2
    %119 = vperm.xlu0 %118, %v30
    %v120 = vpop.permute.xlu0 %119
    %122 = vset.pattern.permute.xlu0 2
    %123 = vperm.xlu0 %122, %v31
    %v124 = vpop.permute.xlu0 %123
    %126 = vset.pattern.permute.xlu0 2
    %127 = vperm.xlu0 %126, %v32
    %v128 = vpop.permute.xlu0 %127
    %130 = vset.pattern.permute.xlu0 2
    %131 = vperm.xlu0 %130, %v33
    %v132 = vpop.permute.xlu0 %131
    %v134 = vlaneseq
    %v135 = vshrl.u32 %v134, 7
    %v136 = vsub.s32 2, %v135
    %v137 = vrot.slane %v29, %v136
    %v138 = vmul.f32 %v120, %v137
    %v139 = vmul.f32 %v124, %v137
    %v140 = vmul.f32 %v128, %v137
    %v141 = vmul.f32 %v132, %v137
    %v142 = vadd.f32 %v114, %v138
    %v143 = vadd.f32 %v115, %v139
    %v144 = vadd.f32 %v116, %v140
    %v145 = vadd.f32 %v117, %v141
    %v146 = vmax.f32 %v142, 0.0
    %v147 = vmax.f32 %v143, 0.0
    %v148 = vmax.f32 %v144, 0.0
    %v149 = vmax.f32 %v145, 0.0
    %v150 = vld [vmem:[%s3] sm:$0xff]
    %v151 = vld [vmem:[%s3 + $0x8] sm:$0xff]
    %v152 = vld [vmem:[%s3 + $0x10] sm:$0xff]
    %v153 = vld [vmem:[%s3 + $0x18] sm:$0xff]
    %v154 = vld [vmem:[%s4] sm:$0xff]
    %v155 = vld [vmem:[%s4 + $0x8] sm:$0xff]
    %v156 = vld [vmem:[%s4 + $0x10] sm:$0xff]
    %v157 = vld [vmem:[%s4 + $0x18] sm:$0xff]
    %159 = vset.pattern.permute.xlu0 0
    %160 = vperm.xlu0 %159, %v154
    %v161 = vpop.permute.xlu0 %160
    %164 = vset.pattern.permute.xlu0 0
    %165 = vperm.xlu0 %164, %v155
    %v166 = vpop.permute.xlu0 %165
    %169 = vset.pattern.permute.xlu0 0
    %170 = vperm.xlu0 %169, %v156
    %v171 = vpop.permute.xlu0 %170
    %174 = vset.pattern.permute.xlu0 0
    %175 = vperm.xlu0 %174, %v157
    %v176 = vpop.permute.xlu0 %175
    %vm178 = vcmask 261120
    %v180 = vsel %vm178, %v150, 0
    %v183 = vsel %vm178, %v151, 0
    %v186 = vsel %vm178, %v152, 0
    %v189 = vsel %vm178, %v153, 0
    %191 = vmatprep.subr.mxu0 0.0
    %192 = vmatpush1.msra.mxu0 %v146
    %193 = vmatprep.subr.mxu0 0.0
    %194 = vmatpush1.msra.mxu0 %v147
    %195 = vmatprep.subr.mxu0 0.0
    %196 = vmatpush1.msra.mxu0 %v148
    %197 = vmatprep.subr.mxu0 0.0
    %198 = vmatpush1.msra.mxu0 %v149
    %199 = vmatprep.subr.mxu0 0.0
    %200 = vmatpush1.msra.mxu0 0.0
    %201 = vmatprep.subr.mxu0 0.0
    %202 = vmatpush1.msra.mxu0 0.0
    %203 = vmatprep.subr.mxu0 0.0
    %204 = vmatpush1.msra.mxu0 0.0
    %205 = vmatprep.subr.mxu0 0.0
    %206 = vmatpush1.msra.mxu0 0.0
    %207 = vmatprep.subr.mxu0 0.0
    %208 = vmatpush1.msra.mxu0 0.0
    %209 = vmatprep.subr.mxu0 0.0
    %210 = vmatpush1.msra.mxu0 0.0
    %211 = vmatprep.subr.mxu0 0.0
    %212 = vmatpush1.msra.mxu0 0.0
    %213 = vmatprep.subr.mxu0 0.0
    %214 = vmatpush1.msra.mxu0 0.0
    %215 = vmatprep.subr.mxu0 0.0
    %216 = vmatpush1.msra.mxu0 0.0
    %217 = vmatprep.subr.mxu0 0.0
    %218 = vmatpush1.msra.mxu0 0.0
    %219 = vmatprep.subr.mxu0 0.0
    %220 = vmatpush1.msra.mxu0 0.0
    %221 = vmatprep.subr.mxu0 0.0
    %222 = vmatpush1.msra.mxu0 0.0
    %223 = vmatprep.subr.mxu0 0.0
    %224 = vmatpush1.msra.mxu0 0.0
    %225 = vmatprep.subr.mxu0 0.0
    %226 = vmatpush1.msra.mxu0 0.0
    %227 = vmatprep.subr.mxu0 0.0
    %228 = vmatpush1.msra.mxu0 0.0
    %229 = vmatprep.subr.mxu0 0.0
    %230 = vmatpush1.msra.mxu0 0.0
    %231 = vmatprep.subr.mxu0 0.0
    %232 = vmatpush1.msra.mxu0 0.0
    %233 = vmatprep.subr.mxu0 0.0
    %234 = vmatpush1.msra.mxu0 0.0
    %235 = vmatprep.subr.mxu0 0.0
    %236 = vmatpush1.msra.mxu0 0.0
    %237 = vmatprep.subr.mxu0 0.0
    %238 = vmatpush1.msra.mxu0 0.0
    %239 = vmatprep.subr.mxu0 0.0
    %240 = vmatpush1.msra.mxu0 0.0
    %241 = vmatprep.subr.mxu0 0.0
    %242 = vmatpush1.msra.mxu0 0.0
    %243 = vmatprep.subr.mxu0 0.0
    %244 = vmatpush1.msra.mxu0 0.0
    %245 = vmatprep.subr.mxu0 0.0
    %246 = vmatpush1.msra.mxu0 0.0
    %247 = vmatprep.subr.mxu0 0.0
    %248 = vmatpush1.msra.mxu0 0.0
    %249 = vmatprep.subr.mxu0 0.0
    %250 = vmatpush1.msra.mxu0 0.0
    %251 = vmatprep.subr.mxu0 0.0
    %252 = vmatpush1.msra.mxu0 0.0
    %253 = vmatprep.subr.mxu0 0.0
    %254 = vmatpush1.msra.mxu0 0.0
    %255 = vmatprep.mubr.f32.mxu0 0.0
    %256 = vmatmul.mubr.f32.gmra.mrb[0].mxu0 %v180
    %v257 = vpop.f32.mrb[0].mxu0
    %v258 = vadd.f32 %v161, %v257
    %v259 = vpop.f32.mrb[0].mxu0
    %260 = vmatprep.mubr.f32.mxu0 0.0
    %261 = vmatmul.mubr.f32.gmra.mrb[0].mxu0 %v183
    %v262 = vpop.f32.mrb[0].mxu0
    %v263 = vadd.f32 %v166, %v262
    %v264 = vpop.f32.mrb[0].mxu0
    %265 = vmatprep.mubr.f32.mxu0 0.0
    %266 = vmatmul.mubr.f32.gmra.mrb[0].mxu0 %v186
    %v267 = vpop.f32.mrb[0].mxu0
    %v268 = vadd.f32 %v171, %v267
    %v269 = vpop.f32.mrb[0].mxu0
    %270 = vmatprep.mubr.f32.mxu0 0.0
    %271 = vmatmul.mubr.f32.gmra.mrb[0].mxu0 %v189
    %v272 = vpop.f32.mrb[0].mxu0
    %v273 = vadd.f32 %v176, %v272
    %v274 = vpop.f32.mrb[0].mxu0
    %275 = vdwg.mxu0
    %v276 = vmax.f32 %v258, 0.0
    %v277 = vmax.f32 %v263, 0.0
    %v278 = vmax.f32 %v268, 0.0
    %v279 = vmax.f32 %v273, 0.0
    %v280 = vld [vmem:[%s5] sm:$0xff]
    %v281 = vld [vmem:[%s5 + $0x8] sm:$0xff]
    %v282 = vld [vmem:[%s5 + $0x10] sm:$0xff]
    %v283 = vld [vmem:[%s5 + $0x18] sm:$0xff]
    %v284 = vld [vmem:[#allocation2] sm:$0x1]
    %286 = vset.pattern.permute.xlu0 0
    %287 = vperm.xlu0 %286, %v280
    %v288 = vpop.permute.xlu0 %287
    %291 = vset.pattern.permute.xlu0 0
    %292 = vperm.xlu0 %291, %v281
    %v293 = vpop.permute.xlu0 %292
    %296 = vset.pattern.permute.xlu0 0
    %297 = vperm.xlu0 %296, %v282
    %v298 = vpop.permute.xlu0 %297
    %301 = vset.pattern.permute.xlu0 0
    %302 = vperm.xlu0 %301, %v283
    %v303 = vpop.permute.xlu0 %302
    %v305 = vmul.f32 %v288, %v276
    %v306 = vmul.f32 %v293, %v277
    %v307 = vmul.f32 %v298, %v278
    %v308 = vmul.f32 %v303, %v279
    %v309 = vadd.f32 %v305, %v306
    %v310 = vadd.f32 %v309, %v307
    %v311 = vadd.f32 %v310, %v308
    %v312 = vrot.slane %v311, 4
    %v313 = vadd.f32 %v311, %v312
    %v314 = vrot.slane %v313, 2
    %v315 = vadd.f32 %v313, %v314
    %v316 = vrot.slane %v315, 1
    %v317 = vadd.f32 %v315, %v316
    %319 = vset.pattern.permute.xlu0 0
    %320 = vperm.xlu0 %319, %v284
    %v321 = vpop.permute.xlu0 %320
    %v323 = vlaneseq
    %v324 = vshrl.u32 %v323, 7
    %v325 = vsub.s32 0, %v324
    %v326 = vrot.slane %v321, %v325
    %v327 = vadd.f32 %v317, %v326
    %v328 = vxor.u32 %v327, 2147483648
    %v329 = vmul.f32 %v328, 1.442695
    %v330 = vpow.pop %v329
    %v331 = vadd.f32 %v330, 1.0
    %v332 = vrcp.pop %v331
    %v333 = vmul.f32 1.0, %v332
    %334 = vst [vmem:[#allocation3] sm:$0x1] %v333
    // Predicated region
    $region30: #{tpu_custom_call.1} parent=1 // pred_check
      _
    $region31: #{tpu_custom_call.1} parent=1 // pred_check_branch
      %336 = sbr.rel (0) target = $region33
    $region32: #{tpu_custom_call.1} parent=1 // pred_region
      %s338 = ssub.s32 16, 16
      %339 = vsyncadd [#allocation4], %s338
      %s341 = sshll.u32 [#allocation3], 4
      %s342 = int_to_ptr.vmem [resolvable:$true] %s341
      %344 = dma.vmem_to_hbm [thread:$0]  %s342, 16, %s7, [#allocation4]
    $region33: #{tpu_custom_call.1} parent=1 // pred_fallthru
      _
    // Predicated region
    $region34: #{tpu_custom_call.1} parent=1 // pred_check
      _
    $region35: #{tpu_custom_call.1} parent=1 // pred_check_branch
      %346 = sbr.rel (0) target = $region37
    $region36: #{tpu_custom_call.1} parent=1 // pred_region
      %347 = dma.done [#allocation4], 16
    $region37: #{tpu_custom_call.1} parent=1 // pred_fallthru
      _
    %348 = vsyncpa [#allocation4], 1

</llo_original>
